<compile_context>
chip_gen: v7x
topology: tpu7x:2x2x1
jax: 0.10.0
libtpu: 0.0.40
codegen_flags: <defaults>
</compile_context>

<pallas_src>
import functools

import jax
import jax.numpy as jnp
from jax import lax
from jax.experimental import pallas as pl
from jax.experimental.pallas import tpu as pltpu


def spatial_attn_kernel(w_ref, x_ref, o_ref, *, W):
    """One batch block: channel mean/max -> 7x1 conv along H -> sigmoid.

    w_ref: SMEM (14,)        conv taps, ordered [avg k=0..6, max k=0..6].
    x_ref: VMEM (Bt, C, H*W) inputs, spatial dims flattened onto the lane axis.
    o_ref: VMEM (Bt, H*W)    attention map.
    """
    Bt, C, HW = x_ref.shape

    # ---- channel mean & max (the HBM-dominant part, lane-dense) ------------
    if C > 8 and C % 8 == 0:
        # Stream channels in 8-wide (sublane-aligned) chunks to bound vreg
        # live ranges when the block is large.
        def body(i, carry):
            s, m = carry
            c0 = pl.multiple_of(i * 8, 8)
            blk = x_ref[:, pl.ds(c0, 8), :].astype(jnp.float32)  # (Bt, 8, HW)
            return s + jnp.sum(blk, axis=1), jnp.maximum(m, jnp.max(blk, axis=1))

        csum, cmax = lax.fori_loop(
            0, C // 8, body,
            (jnp.zeros((Bt, HW), jnp.float32),
             jnp.full((Bt, HW), -jnp.inf, jnp.float32)),
            unroll=(C // 8 <= 8))
    else:
        xb = x_ref[...].astype(jnp.float32)                      # (Bt, C, HW)
        csum, cmax = jnp.sum(xb, axis=1), jnp.max(xb, axis=1)
    cavg = csum * (1.0 / C)

    # ---- 7x1 conv along H (zero padding 3) on the flattened lane axis ------
    # Shifting by one H row == shifting by W lanes: use pltpu.roll (XLU slot)
    # plus a contiguous iota edge mask for the zero padding, instead of a
    # zero-pad concat + unaligned slices.
    flat = lax.broadcasted_iota(jnp.int32, (Bt, HW), 1)
    acc = jnp.zeros((Bt, HW), jnp.float32)
    for k in range(7):                       # static, unrolled at trace time
        rows = k - 3                         # source row offset of this tap
        if rows == 0:
            acc = acc + w_ref[k] * cavg + w_ref[7 + k] * cmax
        else:
            shift = (-rows * W) % HW         # rolled[p] == in[p + rows*W]
            tap = (w_ref[k] * pltpu.roll(cavg, shift, axis=1)
                   + w_ref[7 + k] * pltpu.roll(cmax, shift, axis=1))
            lo = max(0, -rows) * W           # valid (non-padded) output range
            hi = HW - max(0, rows) * W
            acc = acc + jnp.where((flat >= lo) & (flat < hi), tap, 0.0)

    o_ref[...] = jax.nn.sigmoid(acc).astype(o_ref.dtype)


def spatial_attention(x, w):
    """x: (B, C, H, W); w: (2, 7) conv taps (== torch weight[0, :, :, 0]).

    Returns sigmoid(conv2d_{7x1, pad=(3,0)}(cat([mean_c, max_c], 1))) with
    shape (B, 1, H, W), identical to the PyTorch SpatialAttention forward.
    """
    B, C, H, W = x.shape
    HW = H * W

    # Lane-dense layout: flatten the spatial dims onto the lane axis (free).
    x_flat = x.reshape(B, C, HW)
    # 1-D SMEM weights: (14,) pads to 64 B instead of the 4 KiB of a 2-D ref.
    w_flat = w.astype(jnp.float32).reshape(14)

    # Batch tile: largest divisor of B whose input block stays a few MiB
    # (per-grid-step overhead ~0.35 us -> favor big, double-buffered blocks).
    bytes_per_batch = C * HW * x.dtype.itemsize
    max_bt = max(1, int((4 * 1024 * 1024) // bytes_per_batch))
    cands = [d for d in range(1, min(B, max_bt) + 1) if B % d == 0]
    # Keep the output block (bt, HW) tileable: bt == B (full dim) or bt % 8 == 0.
    bt = max([d for d in cands if d == B or d % 8 == 0] or cands)

    # Note: for very large C (e.g. v7x's 64 MiB VMEM), a channel grid axis
    # marked "arbitrary" with sum/max accumulator scratch would bound the
    # per-step VMEM; unnecessary at these sizes.
    out_flat = pl.pallas_call(
        functools.partial(spatial_attn_kernel, W=W),
        out_shape=jax.ShapeDtypeStruct((B, HW), x.dtype),
        grid=(B // bt,),
        in_specs=[
            pl.BlockSpec(memory_space=pltpu.MemorySpace.SMEM),    # conv taps
            pl.BlockSpec((bt, C, HW), lambda b: (b, 0, 0)),       # x block
        ],
        out_specs=pl.BlockSpec((bt, HW), lambda b: (b, 0)),
        compiler_params=pltpu.CompilerParams(
            # parallel batch axis -> shards across the 2 TensorCores on v7x
            dimension_semantics=("parallel",),
            # explicit scoped-VMEM budget (v5e default is only 16 MiB)
            vmem_limit_bytes=32 * 1024 * 1024,
        ),
    )(w_flat, x_flat)

    return out_flat.reshape(B, 1, H, W)


def reference(x, w):
    """Pure-JAX reference matching the PyTorch forward exactly."""
    avg = jnp.mean(x, axis=1, keepdims=True)
    mx = jnp.max(x, axis=1, keepdims=True)
    cat = jnp.concatenate([avg, mx], axis=1)                 # (B, 2, H, W)
    w_full = w.reshape(1, 2, 7, 1)                           # OIHW
    out = lax.conv_general_dilated(
        cat, w_full, window_strides=(1, 1),
        padding=((3, 3), (0, 0)),
        dimension_numbers=("NCHW", "OIHW", "NCHW"))
    return jax.nn.sigmoid(out)


if __name__ == "__main__":
    key = jax.random.PRNGKey(0)
    kx, kw = jax.random.split(key)

    B, C, H, W = 2, 4, 16, 16
    x = jax.random.normal(kx, (B, C, H, W), dtype=jnp.float32)

    # Deterministic conv weight init (kaiming-uniform-like scale, fan_in = 2*7).
    fan_in = 2 * 7
    bound = 1.0 / jnp.sqrt(fan_in)
    w = jax.random.uniform(kw, (2, 7), dtype=jnp.float32,
                           minval=-bound, maxval=bound)

    out = spatial_attention(x, w)
    out = jax.block_until_ready(out)

    ref = reference(x, w)
    assert out.shape == (B, 1, H, W)
    assert jnp.allclose(out, ref, atol=1e-5, rtol=1e-5), "mismatch vs reference"

    print("KERNEL_OK")
</pallas_src>

<mosaic_0001>
module attributes {stable_mosaic.version = 11 : i64} {
  func.func @spatial_attn_kernel(%arg0: i32, %arg1: memref<14xf32, #tpu.memory_space<smem>>, %arg2: memref<2x4x256xf32, #tpu.memory_space<vmem>>, %arg3: memref<2x256xf32, #tpu.memory_space<vmem>>) attributes {dimension_semantics = [#tpu.dimension_semantics<parallel>], iteration_bounds = array<i64: 1>, scalar_prefetch = 0 : i64, scratch_operands = 0 : i64, tpu.core_type = #tpu.core_type<tc>, window_params = [{transform_indices = @transform_0, window_bounds = array<i64: 14>}, {transform_indices = @transform_1, window_bounds = array<i64: 2, 4, 256>}, {transform_indices = @transform_2, window_bounds = array<i64: 2, 256>}]} {
    %c0 = arith.constant 0 : index
    %c0_0 = arith.constant 0 : index
    %c0_1 = arith.constant 0 : index
    %0 = vector.load %arg2[%c0, %c0_0, %c0_1] : memref<2x4x256xf32, #tpu.memory_space<vmem>>, vector<2x4x256xf32>
    %cst = arith.constant dense<0.000000e+00> : vector<2x256xf32>
    %1 = vector.multi_reduction <add>, %0, %cst [1] : vector<2x4x256xf32> to vector<2x256xf32>
    %cst_2 = arith.constant dense<0xFF800000> : vector<2x256xf32>
    %2 = vector.multi_reduction <maximumf>, %0, %cst_2 [1] : vector<2x4x256xf32> to vector<2x256xf32>
    %cst_3 = arith.constant 2.500000e-01 : f32
    %3 = vector.broadcast %cst_3 : f32 to vector<2x256xf32>
    %4 = arith.mulf %1, %3 : vector<2x256xf32>
    %5 = tpu.iota {dimensions = array<i32: 1>} : vector<2x256xi32>
    %cst_4 = arith.constant 0.000000e+00 : f32
    %6 = vector.broadcast %cst_4 : f32 to vector<2x256xf32>
    %c0_5 = arith.constant 0 : index
    %7 = memref.load %arg1[%c0_5] : memref<14xf32, #tpu.memory_space<smem>>
    %c48_i32 = arith.constant 48 : i32
    %8 = tpu.dynamic_rotate %4 by %c48_i32 dim 1 : vector<2x256xf32>, i32 -> vector<2x256xf32>
    %9 = vector.broadcast %7 : f32 to vector<2x256xf32>
    %10 = arith.mulf %9, %8 : vector<2x256xf32>
    %c7 = arith.constant 7 : index
    %11 = memref.load %arg1[%c7] : memref<14xf32, #tpu.memory_space<smem>>
    %c48_i32_6 = arith.constant 48 : i32
    %12 = tpu.dynamic_rotate %2 by %c48_i32_6 dim 1 : vector<2x256xf32>, i32 -> vector<2x256xf32>
    %13 = vector.broadcast %11 : f32 to vector<2x256xf32>
    %14 = arith.mulf %13, %12 : vector<2x256xf32>
    %15 = arith.addf %10, %14 : vector<2x256xf32>
    %c48_i32_7 = arith.constant 48 : i32
    %16 = vector.broadcast %c48_i32_7 : i32 to vector<2x256xi32>
    %17 = arith.cmpi sge, %5, %16 : vector<2x256xi32>
    %c256_i32 = arith.constant 256 : i32
    %18 = vector.broadcast %c256_i32 : i32 to vector<2x256xi32>
    %19 = arith.cmpi slt, %5, %18 : vector<2x256xi32>
    %20 = arith.andi %17, %19 : vector<2x256xi1>
    %cst_8 = arith.constant 0.000000e+00 : f32
    %21 = vector.broadcast %cst_8 : f32 to vector<2x256xf32>
    %22 = arith.select %20, %15, %21 : vector<2x256xi1>, vector<2x256xf32>
    %23 = arith.addf %6, %22 : vector<2x256xf32>
    %c1 = arith.constant 1 : index
    %24 = memref.load %arg1[%c1] : memref<14xf32, #tpu.memory_space<smem>>
    %c32_i32 = arith.constant 32 : i32
    %25 = tpu.dynamic_rotate %4 by %c32_i32 dim 1 : vector<2x256xf32>, i32 -> vector<2x256xf32>
    %26 = vector.broadcast %24 : f32 to vector<2x256xf32>
    %27 = arith.mulf %26, %25 : vector<2x256xf32>
    %c8 = arith.constant 8 : index
    %28 = memref.load %arg1[%c8] : memref<14xf32, #tpu.memory_space<smem>>
    %c32_i32_9 = arith.constant 32 : i32
    %29 = tpu.dynamic_rotate %2 by %c32_i32_9 dim 1 : vector<2x256xf32>, i32 -> vector<2x256xf32>
    %30 = vector.broadcast %28 : f32 to vector<2x256xf32>
    %31 = arith.mulf %30, %29 : vector<2x256xf32>
    %32 = arith.addf %27, %31 : vector<2x256xf32>
    %c32_i32_10 = arith.constant 32 : i32
    %33 = vector.broadcast %c32_i32_10 : i32 to vector<2x256xi32>
    %34 = arith.cmpi sge, %5, %33 : vector<2x256xi32>
    %c256_i32_11 = arith.constant 256 : i32
    %35 = vector.broadcast %c256_i32_11 : i32 to vector<2x256xi32>
    %36 = arith.cmpi slt, %5, %35 : vector<2x256xi32>
    %37 = arith.andi %34, %36 : vector<2x256xi1>
    %cst_12 = arith.constant 0.000000e+00 : f32
    %38 = vector.broadcast %cst_12 : f32 to vector<2x256xf32>
    %39 = arith.select %37, %32, %38 : vector<2x256xi1>, vector<2x256xf32>
    %40 = arith.addf %23, %39 : vector<2x256xf32>
    %c2 = arith.constant 2 : index
    %41 = memref.load %arg1[%c2] : memref<14xf32, #tpu.memory_space<smem>>
    %c16_i32 = arith.constant 16 : i32
    %42 = tpu.dynamic_rotate %4 by %c16_i32 dim 1 : vector<2x256xf32>, i32 -> vector<2x256xf32>
    %43 = vector.broadcast %41 : f32 to vector<2x256xf32>
    %44 = arith.mulf %43, %42 : vector<2x256xf32>
    %c9 = arith.constant 9 : index
    %45 = memref.load %arg1[%c9] : memref<14xf32, #tpu.memory_space<smem>>
    %c16_i32_13 = arith.constant 16 : i32
    %46 = tpu.dynamic_rotate %2 by %c16_i32_13 dim 1 : vector<2x256xf32>, i32 -> vector<2x256xf32>
    %47 = vector.broadcast %45 : f32 to vector<2x256xf32>
    %48 = arith.mulf %47, %46 : vector<2x256xf32>
    %49 = arith.addf %44, %48 : vector<2x256xf32>
    %c16_i32_14 = arith.constant 16 : i32
    %50 = vector.broadcast %c16_i32_14 : i32 to vector<2x256xi32>
    %51 = arith.cmpi sge, %5, %50 : vector<2x256xi32>
    %c256_i32_15 = arith.constant 256 : i32
    %52 = vector.broadcast %c256_i32_15 : i32 to vector<2x256xi32>
    %53 = arith.cmpi slt, %5, %52 : vector<2x256xi32>
    %54 = arith.andi %51, %53 : vector<2x256xi1>
    %cst_16 = arith.constant 0.000000e+00 : f32
    %55 = vector.broadcast %cst_16 : f32 to vector<2x256xf32>
    %56 = arith.select %54, %49, %55 : vector<2x256xi1>, vector<2x256xf32>
    %57 = arith.addf %40, %56 : vector<2x256xf32>
    %c3 = arith.constant 3 : index
    %58 = memref.load %arg1[%c3] : memref<14xf32, #tpu.memory_space<smem>>
    %59 = vector.broadcast %58 : f32 to vector<2x256xf32>
    %60 = arith.mulf %59, %4 : vector<2x256xf32>
    %61 = arith.addf %57, %60 : vector<2x256xf32>
    %c10 = arith.constant 10 : index
    %62 = memref.load %arg1[%c10] : memref<14xf32, #tpu.memory_space<smem>>
    %63 = vector.broadcast %62 : f32 to vector<2x256xf32>
    %64 = arith.mulf %63, %2 : vector<2x256xf32>
    %65 = arith.addf %61, %64 : vector<2x256xf32>
    %c4 = arith.constant 4 : index
    %66 = memref.load %arg1[%c4] : memref<14xf32, #tpu.memory_space<smem>>
    %c240_i32 = arith.constant 240 : i32
    %67 = tpu.dynamic_rotate %4 by %c240_i32 dim 1 : vector<2x256xf32>, i32 -> vector<2x256xf32>
    %68 = vector.broadcast %66 : f32 to vector<2x256xf32>
    %69 = arith.mulf %68, %67 : vector<2x256xf32>
    %c11 = arith.constant 11 : index
    %70 = memref.load %arg1[%c11] : memref<14xf32, #tpu.memory_space<smem>>
    %c240_i32_17 = arith.constant 240 : i32
    %71 = tpu.dynamic_rotate %2 by %c240_i32_17 dim 1 : vector<2x256xf32>, i32 -> vector<2x256xf32>
    %72 = vector.broadcast %70 : f32 to vector<2x256xf32>
    %73 = arith.mulf %72, %71 : vector<2x256xf32>
    %74 = arith.addf %69, %73 : vector<2x256xf32>
    %c0_i32 = arith.constant 0 : i32
    %75 = vector.broadcast %c0_i32 : i32 to vector<2x256xi32>
    %76 = arith.cmpi sge, %5, %75 : vector<2x256xi32>
    %c240_i32_18 = arith.constant 240 : i32
    %77 = vector.broadcast %c240_i32_18 : i32 to vector<2x256xi32>
    %78 = arith.cmpi slt, %5, %77 : vector<2x256xi32>
    %79 = arith.andi %76, %78 : vector<2x256xi1>
    %cst_19 = arith.constant 0.000000e+00 : f32
    %80 = vector.broadcast %cst_19 : f32 to vector<2x256xf32>
    %81 = arith.select %79, %74, %80 : vector<2x256xi1>, vector<2x256xf32>
    %82 = arith.addf %65, %81 : vector<2x256xf32>
    %c5 = arith.constant 5 : index
    %83 = memref.load %arg1[%c5] : memref<14xf32, #tpu.memory_space<smem>>
    %c224_i32 = arith.constant 224 : i32
    %84 = tpu.dynamic_rotate %4 by %c224_i32 dim 1 : vector<2x256xf32>, i32 -> vector<2x256xf32>
    %85 = vector.broadcast %83 : f32 to vector<2x256xf32>
    %86 = arith.mulf %85, %84 : vector<2x256xf32>
    %c12 = arith.constant 12 : index
    %87 = memref.load %arg1[%c12] : memref<14xf32, #tpu.memory_space<smem>>
    %c224_i32_20 = arith.constant 224 : i32
    %88 = tpu.dynamic_rotate %2 by %c224_i32_20 dim 1 : vector<2x256xf32>, i32 -> vector<2x256xf32>
    %89 = vector.broadcast %87 : f32 to vector<2x256xf32>
    %90 = arith.mulf %89, %88 : vector<2x256xf32>
    %91 = arith.addf %86, %90 : vector<2x256xf32>
    %c0_i32_21 = arith.constant 0 : i32
    %92 = vector.broadcast %c0_i32_21 : i32 to vector<2x256xi32>
    %93 = arith.cmpi sge, %5, %92 : vector<2x256xi32>
    %c224_i32_22 = arith.constant 224 : i32
    %94 = vector.broadcast %c224_i32_22 : i32 to vector<2x256xi32>
    %95 = arith.cmpi slt, %5, %94 : vector<2x256xi32>
    %96 = arith.andi %93, %95 : vector<2x256xi1>
    %cst_23 = arith.constant 0.000000e+00 : f32
    %97 = vector.broadcast %cst_23 : f32 to vector<2x256xf32>
    %98 = arith.select %96, %91, %97 : vector<2x256xi1>, vector<2x256xf32>
    %99 = arith.addf %82, %98 : vector<2x256xf32>
    %c6 = arith.constant 6 : index
    %100 = memref.load %arg1[%c6] : memref<14xf32, #tpu.memory_space<smem>>
    %c208_i32 = arith.constant 208 : i32
    %101 = tpu.dynamic_rotate %4 by %c208_i32 dim 1 : vector<2x256xf32>, i32 -> vector<2x256xf32>
    %102 = vector.broadcast %100 : f32 to vector<2x256xf32>
    %103 = arith.mulf %102, %101 : vector<2x256xf32>
    %c13 = arith.constant 13 : index
    %104 = memref.load %arg1[%c13] : memref<14xf32, #tpu.memory_space<smem>>
    %c208_i32_24 = arith.constant 208 : i32
    %105 = tpu.dynamic_rotate %2 by %c208_i32_24 dim 1 : vector<2x256xf32>, i32 -> vector<2x256xf32>
    %106 = vector.broadcast %104 : f32 to vector<2x256xf32>
    %107 = arith.mulf %106, %105 : vector<2x256xf32>
    %108 = arith.addf %103, %107 : vector<2x256xf32>
    %c0_i32_25 = arith.constant 0 : i32
    %109 = vector.broadcast %c0_i32_25 : i32 to vector<2x256xi32>
    %110 = arith.cmpi sge, %5, %109 : vector<2x256xi32>
    %c208_i32_26 = arith.constant 208 : i32
    %111 = vector.broadcast %c208_i32_26 : i32 to vector<2x256xi32>
    %112 = arith.cmpi slt, %5, %111 : vector<2x256xi32>
    %113 = arith.andi %110, %112 : vector<2x256xi1>
    %cst_27 = arith.constant 0.000000e+00 : f32
    %114 = vector.broadcast %cst_27 : f32 to vector<2x256xf32>
    %115 = arith.select %113, %108, %114 : vector<2x256xi1>, vector<2x256xf32>
    %116 = arith.addf %99, %115 : vector<2x256xf32>
    %117 = arith.negf %116 : vector<2x256xf32>
    %118 = math.exp %117 : vector<2x256xf32>
    %cst_28 = arith.constant 1.000000e+00 : f32
    %119 = vector.broadcast %cst_28 : f32 to vector<2x256xf32>
    %120 = arith.addf %119, %118 : vector<2x256xf32>
    %121 = arith.divf %119, %120 : vector<2x256xf32>
    %c0_29 = arith.constant 0 : index
    %c0_30 = arith.constant 0 : index
    %122 = vector.load %arg3[%c0_29, %c0_30] : memref<2x256xf32, #tpu.memory_space<vmem>>, vector<2x256xf32>
    tpu.vector_store %arg3[%c0_29, %c0_30], %121 {strides = array<i32>} : memref<2x256xf32, #tpu.memory_space<vmem>>, vector<2x256xf32>,
    return
  }
  func.func @transform_0(%arg0: i32) -> i32 {
    %c0_i32 = arith.constant 0 : i32
    %c0_i32_0 = arith.constant 0 : i32
    return %c0_i32 : i32
  }
  func.func @transform_1(%arg0: i32) -> (i32, i32, i32) {
    %c0_i32 = arith.constant 0 : i32
    %c0_i32_0 = arith.constant 0 : i32
    %c0_i32_1 = arith.constant 0 : i32
    return %arg0, %c0_i32, %c0_i32_0 : i32, i32, i32
  }
  func.func @transform_2(%arg0: i32) -> (i32, i32) {
    %c0_i32 = arith.constant 0 : i32
    %c0_i32_0 = arith.constant 0 : i32
    return %arg0, %c0_i32 : i32, i32
  }
}

</mosaic_0001>

<llo_original>
// kernel: tpu_custom_call.1
$region0: #{tpu_custom_call.1}
  #allocation0 [shape = 'u32[]', space=smem, size = 0x4, offset = 0x4, fixed_abs, tag = 'smem constant byte address 0x4 - core index']
  #allocation1 [shape = 'u32[144,128]{1,0:T(1,128)}', space=vmem, size = 0x12000, scoped, tag = 'internal scratch']
  %s0 = inlined_call_operand.hbm [shape: f32[14], index: 0, kind: input, shape index: {}]
  %s1 = inlined_call_operand.hbm [shape: f32[2,4,256], index: 1, kind: input, shape index: {}]
  %s2 = inlined_call_operand.hbm [shape: f32[2,256], index: 2, kind: output, shape index: {}]
  %s3 = sld [smem:[#allocation0]]
  $region26: #{tpu_custom_call.1} parent=0
    _
  %s5 = ssub.s32 1, %s3
  %s6 = scalar_select 0, %s5, %s3
  $region1: #{tpu_custom_call.1} parent=0
    #allocation2 [shape = 'u8[512]{0}', space=smem, size = 0x200, scoped, tag = 'input window, operand 0, single buffered']
    #allocation3 [shape = 's32[1]{0}', space=sflag, size = 0x4, scoped, tag = 'scoped memory for tpu_custom_call.1']
    #allocation4 [shape = 's32[1]{0}', space=sflag, size = 0x4, scoped, tag = 'scoped memory for tpu_custom_call.1']
    #allocation5 [shape = 's32[1]{0}', space=sflag, size = 0x4, scoped, tag = 'scoped memory for tpu_custom_call.1']
    #allocation6 [shape = 'u8[8192]{0}', space=vmem, size = 0x2000, scoped, tag = 'input window, operand 1, single buffered']
    #allocation7 [shape = 'u8[2048]{0}', space=vmem, size = 0x800, scoped, tag = 'output window, operand 0, single buffered']
    %7 = vsyncpa [#allocation5], 0
    %8 = vsyncpa [#allocation3], 0
    %9 = vsyncpa [#allocation4], 0
    // Predicated region
    $region2: #{tpu_custom_call.1} parent=1 // pred_check
      _
    $region3: #{tpu_custom_call.1} parent=1 // pred_check_branch
      %11 = sbr.rel (0) target = $region5
    $region4: #{tpu_custom_call.1} parent=1 // pred_region
      %s13 = ssub.s32 16, 16
      %14 = vsyncadd [#allocation5], %s13
      %17 = dma.hbm_to_smem %s0, 16, [#allocation2], [#allocation5]
    $region5: #{tpu_custom_call.1} parent=1 // pred_fallthru
      _
    // Predicated region
    $region6: #{tpu_custom_call.1} parent=1 // pred_check
      _
    $region7: #{tpu_custom_call.1} parent=1 // pred_check_branch
      %19 = sbr.rel (0) target = $region9
    $region8: #{tpu_custom_call.1} parent=1 // pred_region
      %s21 = ssub.s32 256, 256
      %22 = vsyncadd [#allocation3], %s21
      %s23 = sshll.u32 [#allocation6], 4
      %s24 = int_to_ptr.vmem [resolvable:$true] %s23
      %29 = dma.hbm_to_vmem [thread:$0]  %s1, 256, %s24, [#allocation3], 128, 128, 8
    $region9: #{tpu_custom_call.1} parent=1 // pred_fallthru
      _
    // Predicated region
    $region10: #{tpu_custom_call.1} parent=1 // pred_check
      _
    $region11: #{tpu_custom_call.1} parent=1 // pred_check_branch
      %31 = sbr.rel (0) target = $region13
    $region12: #{tpu_custom_call.1} parent=1 // pred_region
      %32 = dma.done [#allocation5], 16
    $region13: #{tpu_custom_call.1} parent=1 // pred_fallthru
      _
    // Predicated region
    $region14: #{tpu_custom_call.1} parent=1 // pred_check
      _
    $region15: #{tpu_custom_call.1} parent=1 // pred_check_branch
      %34 = sbr.rel (0) target = $region17
    $region16: #{tpu_custom_call.1} parent=1 // pred_region
      %35 = dma.done [#allocation3], 256
    $region17: #{tpu_custom_call.1} parent=1 // pred_fallthru
      _
    %36 = sfence
    %v37 = vld [vmem:[#allocation6] sm:$0xff]
    %v38 = vld [vmem:[#allocation6 + $0x8] sm:$0xff]
    %v41 = vcombine.high %v37, %v37
    %v42 = vcombine.high %v38, %v38
    %vm45 = vcmask 1043456
    %v46 = vsel %vm45, %v37, 0.0
    %v47 = vrot.slane %v46, 4
    %v48 = vadd.f32 %v46, %v47
    %v49 = vrot.slane %v48, 2
    %v50 = vadd.f32 %v48, %v49
    %v51 = vrot.slane %v50, 1
    %v52 = vadd.f32 %v50, %v51
    %v53 = vsel %vm45, %v41, 0.0
    %v54 = vrot.slane %v53, 4
    %v55 = vadd.f32 %v53, %v54
    %v56 = vrot.slane %v55, 2
    %v57 = vadd.f32 %v55, %v56
    %v58 = vrot.slane %v57, 1
    %v59 = vadd.f32 %v57, %v58
    %v60 = vsel %vm45, %v38, 0.0
    %v61 = vrot.slane %v60, 4
    %v62 = vadd.f32 %v60, %v61
    %v63 = vrot.slane %v62, 2
    %v64 = vadd.f32 %v62, %v63
    %v65 = vrot.slane %v64, 1
    %v66 = vadd.f32 %v64, %v65
    %v67 = vsel %vm45, %v42, 0.0
    %v68 = vrot.slane %v67, 4
    %v69 = vadd.f32 %v67, %v68
    %v70 = vrot.slane %v69, 2
    %v71 = vadd.f32 %v69, %v70
    %v72 = vrot.slane %v71, 1
    %v73 = vadd.f32 %v71, %v72
    %v74 = vsel %vm45, %v37, -inf
    %v75 = vrot.slane %v74, 4
    %v76 = vmax.f32 %v74, %v75
    %v77 = vrot.slane %v76, 2
    %v78 = vmax.f32 %v76, %v77
    %v79 = vrot.slane %v78, 1
    %v80 = vmax.f32 %v78, %v79
    %v81 = vsel %vm45, %v41, -inf
    %v82 = vrot.slane %v81, 4
    %v83 = vmax.f32 %v81, %v82
    %v84 = vrot.slane %v83, 2
    %v85 = vmax.f32 %v83, %v84
    %v86 = vrot.slane %v85, 1
    %v87 = vmax.f32 %v85, %v86
    %v88 = vsel %vm45, %v38, -inf
    %v89 = vrot.slane %v88, 4
    %v90 = vmax.f32 %v88, %v89
    %v91 = vrot.slane %v90, 2
    %v92 = vmax.f32 %v90, %v91
    %v93 = vrot.slane %v92, 1
    %v94 = vmax.f32 %v92, %v93
    %v95 = vsel %vm45, %v42, -inf
    %v96 = vrot.slane %v95, 4
    %v97 = vmax.f32 %v95, %v96
    %v98 = vrot.slane %v97, 2
    %v99 = vmax.f32 %v97, %v98
    %v100 = vrot.slane %v99, 1
    %v101 = vmax.f32 %v99, %v100
    %v102 = vmul.f32 %v52, 0.25
    %v103 = vmul.f32 %v59, 0.25
    %v104 = vmul.f32 %v66, 0.25
    %v105 = vmul.f32 %v73, 0.25
    %v106 = vlaneseq
    %v107 = vand.u32 %v106, 127
    %v108 = vadd.s32 %v107, 128
    %s109 = sld [smem:[#allocation2]]
    %vm114 = vcmask 1041409
    %v115 = vsel %vm114, %v104, %v102
    %v116 = vsel %vm114, %v105, %v103
    %119 = vrot.lane.b32.xlu0 %v115, 48
    %v120 = vpop.permute.xlu0 %119
    %121 = vrot.lane.b32.xlu0 %v116, 48
    %v122 = vpop.permute.xlu0 %121
    %vm123 = vcmp.lt.s32.totalorder %v107, 48
    %v124 = vsel %vm123, %v120, %v122
    %v125 = vsel %vm123, %v122, %v120
    %v126 = vstv %s109
    %v127 = vmul.f32 %v126, %v125
    %v128 = vmul.f32 %v126, %v124
    %s129 = sld [smem:[#allocation2 + $0x7]]
    %v134 = vsel %vm114, %v94, %v80
    %v135 = vsel %vm114, %v101, %v87
    %138 = vrot.lane.b32.xlu0 %v134, 48
    %v139 = vpop.permute.xlu0 %138
    %140 = vrot.lane.b32.xlu0 %v135, 48
    %v141 = vpop.permute.xlu0 %140
    %v142 = vsel %vm123, %v139, %v141
    %v143 = vsel %vm123, %v141, %v139
    %v144 = vstv %s129
    %v145 = vmul.f32 %v144, %v143
    %v146 = vmul.f32 %v144, %v142
    %v147 = vadd.f32 %v127, %v145
    %v148 = vadd.f32 %v128, %v146
    %vm149 = vcmp.ge.s32.totalorder %v107, 48
    %vm150 = vcmp.ge.s32.totalorder %v108, 48
    %vm151 = vcmp.lt.s32.totalorder %v107, 256
    %vm152 = vcmp.lt.s32.totalorder %v108, 256
    %vm153 = vmand %vm149, %vm151
    %vm154 = vmand %vm150, %vm152
    %v155 = vsel %vm153, %v147, 0.0
    %v156 = vsel %vm154, %v148, 0.0
    %v157 = vadd.f32 %v155, 0.0
    %v158 = vadd.f32 %v156, 0.0
    %s159 = sld [smem:[#allocation2 + $0x1]]
    %160 = vrot.lane.b32.xlu0 %v115, 32
    %v161 = vpop.permute.xlu0 %160
    %162 = vrot.lane.b32.xlu0 %v116, 32
    %v163 = vpop.permute.xlu0 %162
    %vm164 = vcmp.lt.s32.totalorder %v107, 32
    %v165 = vsel %vm164, %v161, %v163
    %v166 = vsel %vm164, %v163, %v161
    %v167 = vstv %s159
    %v168 = vmul.f32 %v167, %v166
    %v169 = vmul.f32 %v167, %v165
    %s170 = sld [smem:[#allocation2 + $0x8]]
    %171 = vrot.lane.b32.xlu0 %v134, 32
    %v172 = vpop.permute.xlu0 %171
    %173 = vrot.lane.b32.xlu0 %v135, 32
    %v174 = vpop.permute.xlu0 %173
    %v175 = vsel %vm164, %v172, %v174
    %v176 = vsel %vm164, %v174, %v172
    %v177 = vstv %s170
    %v178 = vmul.f32 %v177, %v176
    %v179 = vmul.f32 %v177, %v175
    %v180 = vadd.f32 %v168, %v178
    %v181 = vadd.f32 %v169, %v179
    %vm182 = vcmp.ge.s32.totalorder %v107, 32
    %vm183 = vcmp.ge.s32.totalorder %v108, 32
    %vm184 = vmand %vm182, %vm151
    %vm185 = vmand %vm183, %vm152
    %v186 = vsel %vm184, %v180, 0.0
    %v187 = vsel %vm185, %v181, 0.0
    %v188 = vadd.f32 %v157, %v186
    %v189 = vadd.f32 %v158, %v187
    %s190 = sld [smem:[#allocation2 + $0x2]]
    %191 = vrot.lane.b32.xlu0 %v115, 16
    %v192 = vpop.permute.xlu0 %191
    %193 = vrot.lane.b32.xlu0 %v116, 16
    %v194 = vpop.permute.xlu0 %193
    %vm195 = vcmp.lt.s32.totalorder %v107, 16
    %v196 = vsel %vm195, %v192, %v194
    %v197 = vsel %vm195, %v194, %v192
    %v198 = vstv %s190
    %v199 = vmul.f32 %v198, %v197
    %v200 = vmul.f32 %v198, %v196
    %s201 = sld [smem:[#allocation2 + $0x9]]
    %202 = vrot.lane.b32.xlu0 %v134, 16
    %v203 = vpop.permute.xlu0 %202
    %204 = vrot.lane.b32.xlu0 %v135, 16
    %v205 = vpop.permute.xlu0 %204
    %v206 = vsel %vm195, %v203, %v205
    %v207 = vsel %vm195, %v205, %v203
    %v208 = vstv %s201
    %v209 = vmul.f32 %v208, %v207
    %v210 = vmul.f32 %v208, %v206
    %v211 = vadd.f32 %v199, %v209
    %v212 = vadd.f32 %v200, %v210
    %vm213 = vcmp.ge.s32.totalorder %v107, 16
    %vm214 = vcmp.ge.s32.totalorder %v108, 16
    %vm215 = vmand %vm213, %vm151
    %vm216 = vmand %vm214, %vm152
    %v217 = vsel %vm215, %v211, 0.0
    %v218 = vsel %vm216, %v212, 0.0
    %v219 = vadd.f32 %v188, %v217
    %v220 = vadd.f32 %v189, %v218
    %s221 = sld [smem:[#allocation2 + $0x3]]
    %v222 = vstv %s221
    %v223 = vmul.f32 %v222, %v102
    %v224 = vmul.f32 %v222, %v103
    %v225 = vmul.f32 %v222, %v104
    %v226 = vmul.f32 %v222, %v105
    %v231 = vsel %vm114, %v225, %v223
    %v232 = vsel %vm114, %v226, %v224
    %v235 = vadd.f32 %v219, %v231
    %v236 = vadd.f32 %v220, %v232
    %s237 = sld [smem:[#allocation2 + $0xa]]
    %v238 = vstv %s237
    %v239 = vmul.f32 %v238, %v80
    %v240 = vmul.f32 %v238, %v87
    %v241 = vmul.f32 %v238, %v94
    %v242 = vmul.f32 %v238, %v101
    %v247 = vsel %vm114, %v241, %v239
    %v248 = vsel %vm114, %v242, %v240
    %v251 = vadd.f32 %v235, %v247
    %v252 = vadd.f32 %v236, %v248
    %s253 = sld [smem:[#allocation2 + $0x4]]
    %254 = vrot.lane.b32.xlu0 %v115, 112
    %v255 = vpop.permute.xlu0 %254
    %256 = vrot.lane.b32.xlu0 %v116, 112
    %v257 = vpop.permute.xlu0 %256
    %vm258 = vcmp.lt.s32.totalorder %v107, 112
    %v259 = vsel %vm258, %v255, %v257
    %v260 = vsel %vm258, %v257, %v255
    %v261 = vstv %s253
    %v262 = vmul.f32 %v261, %v259
    %v263 = vmul.f32 %v261, %v260
    %s264 = sld [smem:[#allocation2 + $0xb]]
    %265 = vrot.lane.b32.xlu0 %v134, 112
    %v266 = vpop.permute.xlu0 %265
    %267 = vrot.lane.b32.xlu0 %v135, 112
    %v268 = vpop.permute.xlu0 %267
    %v269 = vsel %vm258, %v266, %v268
    %v270 = vsel %vm258, %v268, %v266
    %v271 = vstv %s264
    %v272 = vmul.f32 %v271, %v269
    %v273 = vmul.f32 %v271, %v270
    %v274 = vadd.f32 %v262, %v272
    %v275 = vadd.f32 %v263, %v273
    %vm276 = vcmp.ge.s32.totalorder %v107, 0
    %vm277 = vcmp.ge.s32.totalorder %v108, 0
    %vm278 = vcmp.lt.s32.totalorder %v107, 240
    %vm279 = vcmp.lt.s32.totalorder %v108, 240
    %vm280 = vmand %vm276, %vm278
    %vm281 = vmand %vm277, %vm279
    %v282 = vsel %vm280, %v274, 0.0
    %v283 = vsel %vm281, %v275, 0.0
    %v284 = vadd.f32 %v251, %v282
    %v285 = vadd.f32 %v252, %v283
    %s286 = sld [smem:[#allocation2 + $0x5]]
    %287 = vrot.lane.b32.xlu0 %v115, 96
    %v288 = vpop.permute.xlu0 %287
    %289 = vrot.lane.b32.xlu0 %v116, 96
    %v290 = vpop.permute.xlu0 %289
    %vm291 = vcmp.lt.s32.totalorder %v107, 96
    %v292 = vsel %vm291, %v288, %v290
    %v293 = vsel %vm291, %v290, %v288
    %v294 = vstv %s286
    %v295 = vmul.f32 %v294, %v292
    %v296 = vmul.f32 %v294, %v293
    %s297 = sld [smem:[#allocation2 + $0xc]]
    %298 = vrot.lane.b32.xlu0 %v134, 96
    %v299 = vpop.permute.xlu0 %298
    %300 = vrot.lane.b32.xlu0 %v135, 96
    %v301 = vpop.permute.xlu0 %300
    %v302 = vsel %vm291, %v299, %v301
    %v303 = vsel %vm291, %v301, %v299
    %v304 = vstv %s297
    %v305 = vmul.f32 %v304, %v302
    %v306 = vmul.f32 %v304, %v303
    %v307 = vadd.f32 %v295, %v305
    %v308 = vadd.f32 %v296, %v306
    %vm309 = vcmp.lt.s32.totalorder %v107, 224
    %vm310 = vcmp.lt.s32.totalorder %v108, 224
    %vm311 = vmand %vm276, %vm309
    %vm312 = vmand %vm277, %vm310
    %v313 = vsel %vm311, %v307, 0.0
    %v314 = vsel %vm312, %v308, 0.0
    %v315 = vadd.f32 %v284, %v313
    %v316 = vadd.f32 %v285, %v314
    %s317 = sld [smem:[#allocation2 + $0x6]]
    %318 = vrot.lane.b32.xlu0 %v115, 80
    %v319 = vpop.permute.xlu0 %318
    %320 = vrot.lane.b32.xlu0 %v116, 80
    %v321 = vpop.permute.xlu0 %320
    %vm322 = vcmp.lt.s32.totalorder %v107, 80
    %v323 = vsel %vm322, %v319, %v321
    %v324 = vsel %vm322, %v321, %v319
    %v325 = vstv %s317
    %v326 = vmul.f32 %v325, %v323
    %v327 = vmul.f32 %v325, %v324
    %s328 = sld [smem:[#allocation2 + $0xd]]
    %329 = vrot.lane.b32.xlu0 %v134, 80
    %v330 = vpop.permute.xlu0 %329
    %331 = vrot.lane.b32.xlu0 %v135, 80
    %v332 = vpop.permute.xlu0 %331
    %v333 = vsel %vm322, %v330, %v332
    %v334 = vsel %vm322, %v332, %v330
    %v335 = vstv %s328
    %v336 = vmul.f32 %v335, %v333
    %v337 = vmul.f32 %v335, %v334
    %v338 = vadd.f32 %v326, %v336
    %v339 = vadd.f32 %v327, %v337
    %vm340 = vcmp.lt.s32.totalorder %v107, 208
    %vm341 = vcmp.lt.s32.totalorder %v108, 208
    %vm342 = vmand %vm276, %vm340
    %vm343 = vmand %vm277, %vm341
    %v344 = vsel %vm342, %v338, 0.0
    %v345 = vsel %vm343, %v339, 0.0
    %v346 = vadd.f32 %v315, %v344
    %v347 = vadd.f32 %v316, %v345
    %v348 = vxor.u32 %v346, 2147483648
    %v349 = vxor.u32 %v347, 2147483648
    %v350 = vmul.f32 %v348, 1.442695
    %v351 = vpow.pop %v350
    %v352 = vmul.f32 %v349, 1.442695
    %v353 = vpow.pop %v352
    %v354 = vadd.f32 %v351, 1.0
    %v355 = vadd.f32 %v353, 1.0
    %v356 = vrcp.pop %v354
    %v357 = vmul.f32 1.0, %v356
    %v358 = vrcp.pop %v355
    %v359 = vmul.f32 1.0, %v358
    %v362 = vcombine.low %v357, %v359
    %v364 = vunpack.c.l.s4 1983009808
    %v365 = vunpack.c.0.s8 %v364
    %v366 = vlaneseq
    %v367 = vshrl.u32 %v366, 7
    %v368 = vsub.s32 %v365, %v367
    %v369 = vrot.slane %v362, %v368
    %371 = vst [vmem:[#allocation7] sm:$0xf] %v369
    // Predicated region
    $region18: #{tpu_custom_call.1} parent=1 // pred_check
      _
    $region19: #{tpu_custom_call.1} parent=1 // pred_check_branch
      %373 = sbr.rel (0) target = $region21
    $region20: #{tpu_custom_call.1} parent=1 // pred_region
      %s375 = ssub.s32 64, 64
      %376 = vsyncadd [#allocation4], %s375
      %s378 = sshll.u32 [#allocation7], 4
      %s379 = int_to_ptr.vmem [resolvable:$true] %s378
      %381 = dma.vmem_to_hbm [thread:$0]  %s379, 64, %s2, [#allocation4]
    $region21: #{tpu_custom_call.1} parent=1 // pred_fallthru
      _
    // Predicated region
    $region22: #{tpu_custom_call.1} parent=1 // pred_check
      _
    $region23: #{tpu_custom_call.1} parent=1 // pred_check_branch
      %383 = sbr.rel (0) target = $region25
    $region24: #{tpu_custom_call.1} parent=1 // pred_region
      %384 = dma.done [#allocation4], 64
    $region25: #{tpu_custom_call.1} parent=1 // pred_fallthru
      _
    %385 = vsyncpa [#allocation3], 1
    %386 = vsyncpa [#allocation4], 1
    %387 = vsyncpa [#allocation5], 1

</llo_original>
